<compile_context>
chip_gen: v7x
topology: tpu7x:2x2x1
jax: 0.10.0
libtpu: 0.0.40
codegen_flags: <defaults>
</compile_context>

<pallas_src>
import jax
import jax.numpy as jnp
from jax.experimental import pallas as pl
from jax.experimental.pallas import tpu as pltpu

_F32_MIN = float(jnp.finfo(jnp.float32).min)   # finite init avoids -inf - -inf NaNs
_MAX_TILE_ROWS = 512                           # ~1 MiB f32 tile at 512 lanes
_WIDE_LANES = 512                              # lane-dense slab width for big inputs
_VMEM_LIMIT = 32 * 1024 * 1024                 # <= physical VMEM on v5e/v6e/v7x


def _reduce_kernel(x_ref, max_ref, sum_ref, m_scr, l_scr):
    """Pass 1: online (flash-style) global max / sum(exp(x - max)) over row tiles."""
    step = pl.program_id(0)

    @pl.when(step == 0)
    def _init():
        m_scr[...] = jnp.full(m_scr.shape, _F32_MIN, dtype=jnp.float32)
        l_scr[...] = jnp.zeros(l_scr.shape, dtype=jnp.float32)

    x = x_ref[...].astype(jnp.float32)
    # Fold rows (sublanes / vreg rows) first on the VPU, then a single
    # cross-lane (XLU) reduce of the surviving (1, LANES) stripe.
    col_max = jnp.max(x, axis=0, keepdims=True)            # (1, LANES)
    tile_max = jnp.max(col_max, axis=1, keepdims=True)     # (1, 1)

    m_old = m_scr[...]
    m_new = jnp.maximum(m_old, tile_max)

    e = jnp.exp(x - m_new)                                  # -inf padding -> 0
    col_sum = jnp.sum(e, axis=0, keepdims=True)             # (1, LANES)
    tile_sum = jnp.sum(col_sum, axis=1, keepdims=True)      # (1, 1)

    l_scr[...] = l_scr[...] * jnp.exp(m_old - m_new) + tile_sum
    m_scr[...] = m_new

    @pl.when(step == pl.num_programs(0) - 1)
    def _finalize():
        max_ref[...] = m_scr[...]
        sum_ref[...] = l_scr[...]


def _normalize_kernel(m_ref, inv_ref, x_ref, o_ref):
    """Pass 2: out = exp(x - m) * (1 / s), one lane-dense tile per grid step."""
    m = m_ref[0, 0]          # SMEM scalars, broadcast into the vector op
    inv_s = inv_ref[0, 0]
    x = x_ref[...].astype(jnp.float32)
    o_ref[...] = (jnp.exp(x - m) * inv_s).astype(o_ref.dtype)


def _choose_layout(total):
    """Pick a lane-dense (rows_padded, lanes) slab and a sublane-aligned row tile."""
    lanes = _WIDE_LANES if total >= 8 * _WIDE_LANES else 128
    rows = (total + lanes - 1) // lanes
    if rows <= _MAX_TILE_ROWS:
        tile_rows = max(8, ((rows + 7) // 8) * 8)          # single tile
    else:
        tile_rows = _MAX_TILE_ROWS
    rows_padded = ((rows + tile_rows - 1) // tile_rows) * tile_rows
    return lanes, tile_rows, rows_padded


def _softmax_stable(x):
    """Global numerically-stable softmax, equivalent to the PyTorch module."""
    orig_shape = x.shape
    flat = x.reshape(-1)
    total = flat.shape[0]
    lanes, tile_rows, rows_padded = _choose_layout(total)

    # Pad with -inf: exp(-inf - m) == 0, so padding never affects max or sum,
    # and (by construction) every tile contains at least one real element.
    pad = rows_padded * lanes - total
    if pad:
        flat = jnp.concatenate(
            [flat, jnp.full((pad,), -jnp.inf, dtype=flat.dtype)])
    x2d = flat.reshape(rows_padded, lanes)
    ntiles = rows_padded // tile_rows

    tile_spec = pl.BlockSpec((tile_rows, lanes), lambda i: (i, 0))
    scalar_shape = jax.ShapeDtypeStruct((1, 1), jnp.float32)

    # ---- pass 1: global max & sum(exp(x - max)) via online reduction -------
    m_arr, s_arr = pl.pallas_call(
        _reduce_kernel,
        out_shape=(scalar_shape, scalar_shape),
        grid=(ntiles,),
        in_specs=[tile_spec],
        out_specs=(pl.BlockSpec((1, 1), lambda i: (0, 0)),
                   pl.BlockSpec((1, 1), lambda i: (0, 0))),
        scratch_shapes=[pltpu.VMEM((1, 1), jnp.float32),
                        pltpu.VMEM((1, 1), jnp.float32)],
        compiler_params=pltpu.CompilerParams(
            dimension_semantics=("arbitrary",),
            vmem_limit_bytes=_VMEM_LIMIT),
    )(x2d)

    # One-off exact scalar reciprocal (approx would eat the 1e-6 tolerance).
    inv_s = 1.0 / s_arr

    # ---- pass 2: normalize; independent tiles -> "parallel" (2 TCs on v7x);
    #      output aliased onto the padded input slab (it is a temporary). ----
    out2d = pl.pallas_call(
        _normalize_kernel,
        out_shape=jax.ShapeDtypeStruct(x2d.shape, x.dtype),
        grid=(ntiles,),
        in_specs=[pl.BlockSpec(memory_space=pltpu.MemorySpace.SMEM),
                  pl.BlockSpec(memory_space=pltpu.MemorySpace.SMEM),
                  tile_spec],
        out_specs=tile_spec,
        input_output_aliases={2: 0},
        compiler_params=pltpu.CompilerParams(
            dimension_semantics=("parallel",),
            vmem_limit_bytes=_VMEM_LIMIT),
    )(m_arr, inv_s, x2d)

    return out2d.reshape(-1)[:total].reshape(orig_shape)


# jit so the padded slab is an internal temp (clean aliasing, fused glue ops).
softmax_stable = jax.jit(_softmax_stable)


if __name__ == "__main__":
    key = jax.random.PRNGKey(0)

    # Small shape consistent with the module: seq=8, hidden=32.
    x = jax.random.normal(key, (8, 32), dtype=jnp.float32) * 5.0
    y = jax.block_until_ready(softmax_stable(x))

    ref = jnp.exp(x - jnp.max(x)) / jnp.sum(jnp.exp(x - jnp.max(x)))
    assert y.shape == x.shape
    assert jnp.allclose(y, ref, atol=1e-6, rtol=1e-5)
    assert jnp.allclose(jnp.sum(y), 1.0, atol=1e-5)

    # Larger shape to exercise the multi-tile pipelined path (5 row tiles of
    # 512 x 512, lane-dense, no padding).
    xb = jax.random.normal(jax.random.PRNGKey(1), (2048, 640), dtype=jnp.float32)
    yb = jax.block_until_ready(softmax_stable(xb))
    refb = jnp.exp(xb - jnp.max(xb)) / jnp.sum(jnp.exp(xb - jnp.max(xb)))
    assert jnp.allclose(jnp.sum(yb), 1.0, atol=1e-3)
    assert jnp.allclose(yb, refb, rtol=5e-3, atol=1e-10)

    print("KERNEL_OK")
</pallas_src>

<mosaic_0001>
module attributes {stable_mosaic.version = 11 : i64} {
  func.func @_reduce_kernel(%arg0: i32, %arg1: memref<8x128xf32, #tpu.memory_space<vmem>>, %arg2: memref<1x1xf32, #tpu.memory_space<vmem>>, %arg3: memref<1x1xf32, #tpu.memory_space<vmem>>, %arg4: memref<1x1xf32, #tpu.memory_space<vmem>>, %arg5: memref<1x1xf32, #tpu.memory_space<vmem>>) attributes {dimension_semantics = [#tpu.dimension_semantics<arbitrary>], iteration_bounds = array<i64: 1>, scalar_prefetch = 0 : i64, scratch_operands = 2 : i64, tpu.core_type = #tpu.core_type<tc>, window_params = [{transform_indices = @transform_0, window_bounds = array<i64: 8, 128>}, {pipeline_mode = #tpu.pipeline_mode<synchronous>, transform_indices = @transform_1, window_bounds = array<i64: 1, 1>}, {pipeline_mode = #tpu.pipeline_mode<synchronous>, transform_indices = @transform_2, window_bounds = array<i64: 1, 1>}]} {
    %c0_i32 = arith.constant 0 : i32
    %0 = arith.cmpi eq, %arg0, %c0_i32 : i32
    %1 = arith.extui %0 : i1 to i32
    %c0_i32_0 = arith.constant 0 : i32
    %2 = arith.cmpi ne, %1, %c0_i32_0 : i32
    scf.if %2 {
      %cst_15 = arith.constant -3.40282347E+38 : f32
      %27 = vector.broadcast %cst_15 : f32 to vector<1x1xf32>
      %c0_16 = arith.constant 0 : index
      %c0_17 = arith.constant 0 : index
      %28 = vector.load %arg4[%c0_16, %c0_17] : memref<1x1xf32, #tpu.memory_space<vmem>>, vector<1x1xf32>
      tpu.vector_store %arg4[%c0_16, %c0_17], %27 {strides = array<i32>} : memref<1x1xf32, #tpu.memory_space<vmem>>, vector<1x1xf32>,
      %cst_18 = arith.constant 0.000000e+00 : f32
      %29 = vector.broadcast %cst_18 : f32 to vector<1x1xf32>
      %c0_19 = arith.constant 0 : index
      %c0_20 = arith.constant 0 : index
      %30 = vector.load %arg5[%c0_19, %c0_20] : memref<1x1xf32, #tpu.memory_space<vmem>>, vector<1x1xf32>
      tpu.vector_store %arg5[%c0_19, %c0_20], %29 {strides = array<i32>} : memref<1x1xf32, #tpu.memory_space<vmem>>, vector<1x1xf32>,
    } else {
    }
    %c0 = arith.constant 0 : index
    %c0_1 = arith.constant 0 : index
    %3 = vector.load %arg1[%c0, %c0_1] : memref<8x128xf32, #tpu.memory_space<vmem>>, vector<8x128xf32>
    %cst = arith.constant dense<0xFF800000> : vector<128xf32>
    %4 = vector.multi_reduction <maximumf>, %3, %cst [0] : vector<8x128xf32> to vector<128xf32>
    %5 = vector.shape_cast %4 : vector<128xf32> to vector<1x128xf32>
    %cst_2 = arith.constant dense<0xFF800000> : vector<1xf32>
    %6 = vector.multi_reduction <maximumf>, %5, %cst_2 [1] : vector<1x128xf32> to vector<1xf32>
    %7 = vector.shape_cast %6 : vector<1xf32> to vector<1x1xf32>
    %c0_3 = arith.constant 0 : index
    %c0_4 = arith.constant 0 : index
    %8 = vector.load %arg4[%c0_3, %c0_4] : memref<1x1xf32, #tpu.memory_space<vmem>>, vector<1x1xf32>
    %9 = arith.maximumf %8, %7 : vector<1x1xf32>
    %10 = vector.broadcast %9 : vector<1x1xf32> to vector<8x128xf32>
    %11 = arith.subf %3, %10 : vector<8x128xf32>
    %12 = math.exp %11 : vector<8x128xf32>
    %cst_5 = arith.constant dense<0.000000e+00> : vector<128xf32>
    %13 = vector.multi_reduction <add>, %12, %cst_5 [0] : vector<8x128xf32> to vector<128xf32>
    %14 = vector.shape_cast %13 : vector<128xf32> to vector<1x128xf32>
    %cst_6 = arith.constant dense<0.000000e+00> : vector<1xf32>
    %15 = vector.multi_reduction <add>, %14, %cst_6 [1] : vector<1x128xf32> to vector<1xf32>
    %16 = vector.shape_cast %15 : vector<1xf32> to vector<1x1xf32>
    %c0_7 = arith.constant 0 : index
    %c0_8 = arith.constant 0 : index
    %17 = vector.load %arg5[%c0_7, %c0_8] : memref<1x1xf32, #tpu.memory_space<vmem>>, vector<1x1xf32>
    %18 = arith.subf %8, %9 : vector<1x1xf32>
    %19 = math.exp %18 : vector<1x1xf32>
    %20 = arith.mulf %17, %19 : vector<1x1xf32>
    %21 = arith.addf %20, %16 : vector<1x1xf32>
    %c0_9 = arith.constant 0 : index
    %c0_10 = arith.constant 0 : index
    %22 = vector.load %arg5[%c0_9, %c0_10] : memref<1x1xf32, #tpu.memory_space<vmem>>, vector<1x1xf32>
    tpu.vector_store %arg5[%c0_9, %c0_10], %21 {strides = array<i32>} : memref<1x1xf32, #tpu.memory_space<vmem>>, vector<1x1xf32>,
    %c0_11 = arith.constant 0 : index
    %c0_12 = arith.constant 0 : index
    %23 = vector.load %arg4[%c0_11, %c0_12] : memref<1x1xf32, #tpu.memory_space<vmem>>, vector<1x1xf32>
    tpu.vector_store %arg4[%c0_11, %c0_12], %9 {strides = array<i32>} : memref<1x1xf32, #tpu.memory_space<vmem>>, vector<1x1xf32>,
    %c0_i32_13 = arith.constant 0 : i32
    %24 = arith.cmpi eq, %arg0, %c0_i32_13 : i32
    %25 = arith.extui %24 : i1 to i32
    %c0_i32_14 = arith.constant 0 : i32
    %26 = arith.cmpi ne, %25, %c0_i32_14 : i32
    scf.if %26 {
      %c0_15 = arith.constant 0 : index
      %c0_16 = arith.constant 0 : index
      %27 = vector.load %arg4[%c0_15, %c0_16] : memref<1x1xf32, #tpu.memory_space<vmem>>, vector<1x1xf32>
      %c0_17 = arith.constant 0 : index
      %c0_18 = arith.constant 0 : index
      %28 = vector.load %arg2[%c0_17, %c0_18] : memref<1x1xf32, #tpu.memory_space<vmem>>, vector<1x1xf32>
      tpu.vector_store %arg2[%c0_17, %c0_18], %27 {strides = array<i32>} : memref<1x1xf32, #tpu.memory_space<vmem>>, vector<1x1xf32>,
      %c0_19 = arith.constant 0 : index
      %c0_20 = arith.constant 0 : index
      %29 = vector.load %arg5[%c0_19, %c0_20] : memref<1x1xf32, #tpu.memory_space<vmem>>, vector<1x1xf32>
      %c0_21 = arith.constant 0 : index
      %c0_22 = arith.constant 0 : index
      %30 = vector.load %arg3[%c0_21, %c0_22] : memref<1x1xf32, #tpu.memory_space<vmem>>, vector<1x1xf32>
      tpu.vector_store %arg3[%c0_21, %c0_22], %29 {strides = array<i32>} : memref<1x1xf32, #tpu.memory_space<vmem>>, vector<1x1xf32>,
    } else {
    }
    return
  }
  func.func @transform_0(%arg0: i32) -> (i32, i32) {
    %c0_i32 = arith.constant 0 : i32
    %c0_i32_0 = arith.constant 0 : i32
    return %arg0, %c0_i32 : i32, i32
  }
  func.func @transform_1(%arg0: i32) -> (i32, i32) {
    %c0_i32 = arith.constant 0 : i32
    %c0_i32_0 = arith.constant 0 : i32
    %c0_i32_1 = arith.constant 0 : i32
    return %c0_i32, %c0_i32_0 : i32, i32
  }
  func.func @transform_2(%arg0: i32) -> (i32, i32) {
    %c0_i32 = arith.constant 0 : i32
    %c0_i32_0 = arith.constant 0 : i32
    %c0_i32_1 = arith.constant 0 : i32
    return %c0_i32, %c0_i32_0 : i32, i32
  }
}

module attributes {stable_mosaic.version = 11 : i64} {
  func.func @_normalize_kernel(%arg0: i32, %arg1: memref<1x1xf32, #tpu.memory_space<smem>>, %arg2: memref<1x1xf32, #tpu.memory_space<smem>>, %arg3: memref<8x128xf32, #tpu.memory_space<vmem>>, %arg4: memref<8x128xf32, #tpu.memory_space<vmem>>) attributes {dimension_semantics = [#tpu.dimension_semantics<parallel>], iteration_bounds = array<i64: 1>, scalar_prefetch = 0 : i64, scratch_operands = 0 : i64, tpu.core_type = #tpu.core_type<tc>, window_params = [{transform_indices = @transform_0, window_bounds = array<i64: 1, 1>}, {transform_indices = @transform_1, window_bounds = array<i64: 1, 1>}, {transform_indices = @transform_2, window_bounds = array<i64: 8, 128>}, {transform_indices = @transform_3, window_bounds = array<i64: 8, 128>}]} {
    %c0 = arith.constant 0 : index
    %c0_0 = arith.constant 0 : index
    %0 = memref.load %arg1[%c0, %c0_0] : memref<1x1xf32, #tpu.memory_space<smem>>
    %c0_1 = arith.constant 0 : index
    %c0_2 = arith.constant 0 : index
    %1 = memref.load %arg2[%c0_1, %c0_2] : memref<1x1xf32, #tpu.memory_space<smem>>
    %c0_3 = arith.constant 0 : index
    %c0_4 = arith.constant 0 : index
    %2 = vector.load %arg3[%c0_3, %c0_4] : memref<8x128xf32, #tpu.memory_space<vmem>>, vector<8x128xf32>
    %3 = vector.broadcast %0 : f32 to vector<8x128xf32>
    %4 = arith.subf %2, %3 : vector<8x128xf32>
    %5 = math.exp %4 : vector<8x128xf32>
    %6 = vector.broadcast %1 : f32 to vector<8x128xf32>
    %7 = arith.mulf %5, %6 : vector<8x128xf32>
    %c0_5 = arith.constant 0 : index
    %c0_6 = arith.constant 0 : index
    %8 = vector.load %arg4[%c0_5, %c0_6] : memref<8x128xf32, #tpu.memory_space<vmem>>, vector<8x128xf32>
    tpu.vector_store %arg4[%c0_5, %c0_6], %7 {strides = array<i32>} : memref<8x128xf32, #tpu.memory_space<vmem>>, vector<8x128xf32>,
    return
  }
  func.func @transform_0(%arg0: i32) -> (i32, i32) {
    %c0_i32 = arith.constant 0 : i32
    %c0_i32_0 = arith.constant 0 : i32
    %c0_i32_1 = arith.constant 0 : i32
    return %c0_i32, %c0_i32_0 : i32, i32
  }
  func.func @transform_1(%arg0: i32) -> (i32, i32) {
    %c0_i32 = arith.constant 0 : i32
    %c0_i32_0 = arith.constant 0 : i32
    %c0_i32_1 = arith.constant 0 : i32
    return %c0_i32, %c0_i32_0 : i32, i32
  }
  func.func @transform_2(%arg0: i32) -> (i32, i32) {
    %c0_i32 = arith.constant 0 : i32
    %c0_i32_0 = arith.constant 0 : i32
    return %arg0, %c0_i32 : i32, i32
  }
  func.func @transform_3(%arg0: i32) -> (i32, i32) {
    %c0_i32 = arith.constant 0 : i32
    %c0_i32_0 = arith.constant 0 : i32
    return %arg0, %c0_i32 : i32, i32
  }
}

</mosaic_0001>

<llo_original>
// kernel: _softmax_stable.2
$region0: #{_softmax_stable.2}
  #allocation0 [shape = 'u32[]', space=smem, size = 0x4, offset = 0x4, fixed_abs, tag = 'smem constant byte address 0x4 - core index']
  #allocation1 [shape = 'u32[144,128]{1,0:T(1,128)}', space=vmem, size = 0x12000, scoped, tag = 'internal scratch']
  #allocation2 [shape = 'f32[1,1]{1,0:T(1,128)}', space=vmem, size = 0x200, scoped, tag = 'scratch operand']
  #allocation3 [shape = 'f32[1,1]{1,0:T(1,128)}', space=vmem, size = 0x200, scoped, tag = 'scratch operand']
  %s0 = inlined_call_operand.vmem [shape: f32[8,128], index: 0, kind: input, shape index: {}]
  %s1 = inlined_call_operand.hbm [shape: f32[1,1], index: 1, kind: output, shape index: {0}]
  %s2 = inlined_call_operand.hbm [shape: f32[1,1], index: 2, kind: output, shape index: {1}]
  %3 = xla_tuple %s1, %s2
  %s4 = sld [smem:[#allocation0]]
  $region30: #{_softmax_stable.2} parent=0
    _
  %s6 = ssub.s32 1, %s4
  %s7 = scalar_select 0, %s6, %s4
  $region1: #{_softmax_stable.2} parent=0
    #allocation4 [shape = 'u8[512]{0}', space=vmem, size = 0x400, scoped, tag = 'output window, operand 0, single buffered']
    #allocation5 [shape = 's32[1]{0}', space=sflag, size = 0x4, scoped, tag = 'scoped memory for _softmax_stable.2']
    #allocation6 [shape = 'u8[512]{0}', space=vmem, size = 0x400, scoped, tag = 'output window, operand 1, single buffered']
    #allocation7 [shape = 's32[1]{0}', space=sflag, size = 0x4, scoped, tag = 'scoped memory for _softmax_stable.2']
    %8 = vsyncpa [#allocation5], 0
    %9 = vsyncpa [#allocation7], 0
    // Predicated region
    $region2: #{_softmax_stable.2} parent=1 // pred_check
      _
    $region3: #{_softmax_stable.2} parent=1 // pred_check_branch
      %11 = sbr.rel (0) target = $region5
    $region4: #{_softmax_stable.2} parent=1 // pred_region
      _
    $region5: #{_softmax_stable.2} parent=1 // pred_fallthru
      _
    %p12 = scmp.eq.s32.totalorder 0, 0
    // Predicated region
    $region6: #{_softmax_stable.2} parent=1 // pred_check
      %p13 = pneg %p12
    $region7: #{_softmax_stable.2} parent=1 // pred_check_branch
      %15 = sbr.rel (%p13) target = $region9
    $region8: #{_softmax_stable.2} parent=1 // pred_region
      %vm16 = vcmask 0
      %17 = vst.msk [vmem:[#allocation2] sm:$0x1] %vm16, -3.4028235e+38
      %18 = vst.msk [vmem:[#allocation3] sm:$0x1] %vm16, 0.0
    $region9: #{_softmax_stable.2} parent=1 // pred_fallthru
      _
    %v19 = vld [vmem:[%s0] sm:$0xff]
    %v20 = vrot.slane %v19, 4
    %v21 = vmax.f32 %v19, %v20
    %v22 = vrot.slane %v21, 2
    %v23 = vmax.f32 %v21, %v22
    %v24 = vrot.slane %v23, 1
    %v25 = vmax.f32 %v23, %v24
    %26 = vmax.xlane.f32.xlu0 %v25
    %v27 = vpop.xlane.xlu0 %26
    %v28 = vld [vmem:[#allocation2] sm:$0x1]
    %v29 = vmax.f32 %v28, %v27
    %v31 = vlaneseq
    %v32 = vshrl.u32 %v31, 7
    %v33 = vsub.s32 0, %v32
    %v34 = vrot.slane %v29, %v33
    %35 = vset.pattern.permute.xlu0 0
    %36 = vperm.xlu0 %35, %v34
    %v37 = vpop.permute.xlu0 %36
    %v39 = vsub.f32 %v19, %v37
    %v40 = vmul.f32 %v39, 1.442695
    %v41 = vpow.pop %v40
    %v42 = vrot.slane %v41, 4
    %v43 = vadd.f32 %v41, %v42
    %v44 = vrot.slane %v43, 2
    %v45 = vadd.f32 %v43, %v44
    %v46 = vrot.slane %v45, 1
    %v47 = vadd.f32 %v45, %v46
    %48 = vadd.xlane.f32.xlu0 %v47
    %v49 = vpop.xlane.xlu0 %48
    %v50 = vld [vmem:[#allocation3] sm:$0x1]
    %v51 = vsub.f32 %v28, %v29
    %v52 = vmul.f32 %v51, 1.442695
    %v53 = vpow.pop %v52
    %v54 = vmul.f32 %v50, %v53
    %v55 = vadd.f32 %v54, %v49
    %vm56 = vcmask 0
    %57 = vst.msk [vmem:[#allocation3] sm:$0x1] %vm56, %v55
    %58 = vst.msk [vmem:[#allocation2] sm:$0x1] %vm56, %v29
    // Predicated region
    $region10: #{_softmax_stable.2} parent=1 // pred_check
      %p59 = pneg %p12
    $region11: #{_softmax_stable.2} parent=1 // pred_check_branch
      %61 = sbr.rel (%p59) target = $region13
    $region12: #{_softmax_stable.2} parent=1 // pred_region
      %v62 = vld [vmem:[#allocation2] sm:$0x1]
      %63 = vst.msk [vmem:[#allocation4] sm:$0x1] %vm56, %v62
      %v64 = vld [vmem:[#allocation3] sm:$0x1]
      %65 = vst.msk [vmem:[#allocation6] sm:$0x1] %vm56, %v64
    $region13: #{_softmax_stable.2} parent=1 // pred_fallthru
      _
    // Predicated region
    $region14: #{_softmax_stable.2} parent=1 // pred_check
      _
    $region15: #{_softmax_stable.2} parent=1 // pred_check_branch
      %67 = sbr.rel (0) target = $region17
    $region16: #{_softmax_stable.2} parent=1 // pred_region
      %s69 = ssub.s32 16, 16
      %70 = vsyncadd [#allocation5], %s69
      %s72 = sshll.u32 [#allocation4], 4
      %s73 = int_to_ptr.vmem [resolvable:$true] %s72
      %75 = dma.vmem_to_hbm [thread:$0]  %s73, 16, %s1, [#allocation5]
    $region17: #{_softmax_stable.2} parent=1 // pred_fallthru
      _
    // Predicated region
    $region18: #{_softmax_stable.2} parent=1 // pred_check
      _
    $region19: #{_softmax_stable.2} parent=1 // pred_check_branch
      %77 = sbr.rel (0) target = $region21
    $region20: #{_softmax_stable.2} parent=1 // pred_region
      %s79 = ssub.s32 16, 16
      %80 = vsyncadd [#allocation7], %s79
      %s82 = sshll.u32 [#allocation6], 4
      %s83 = int_to_ptr.vmem [resolvable:$true] %s82
      %85 = dma.vmem_to_hbm [thread:$0]  %s83, 16, %s2, [#allocation7]
    $region21: #{_softmax_stable.2} parent=1 // pred_fallthru
      _
    // Predicated region
    $region22: #{_softmax_stable.2} parent=1 // pred_check
      _
    $region23: #{_softmax_stable.2} parent=1 // pred_check_branch
      %87 = sbr.rel (0) target = $region25
    $region24: #{_softmax_stable.2} parent=1 // pred_region
      %88 = dma.done [#allocation5], 16
    $region25: #{_softmax_stable.2} parent=1 // pred_fallthru
      _
    // Predicated region
    $region26: #{_softmax_stable.2} parent=1 // pred_check
      _
    $region27: #{_softmax_stable.2} parent=1 // pred_check_branch
      %90 = sbr.rel (0) target = $region29
    $region28: #{_softmax_stable.2} parent=1 // pred_region
      %91 = dma.done [#allocation7], 16
    $region29: #{_softmax_stable.2} parent=1 // pred_fallthru
      _
    %92 = vsyncpa [#allocation5], 1
    %93 = vsyncpa [#allocation7], 1

// kernel: _softmax_stable.3
$region0: #{_softmax_stable.3}
  #allocation0 [shape = 'u32[]', space=smem, size = 0x4, offset = 0x4, fixed_abs, tag = 'smem constant byte address 0x4 - core index']
  #allocation1 [shape = 'u32[144,128]{1,0:T(1,128)}', space=vmem, size = 0x12000, scoped, tag = 'internal scratch']
  #allocation2 [shape = 'f32[1,1]{1,0:T(1,128)S(6)}', space=smem, size = 0x200, scoped, tag = 'scoped memory for _softmax_stable.3']
  #allocation3 [shape = 'f32[1,1]{1,0:T(1,128)S(6)}', space=smem, size = 0x200, scoped, tag = 'scoped memory for _softmax_stable.3']
  %s0 = inlined_call_operand.<no memory space> [shape: f32[1,1], index: 0, kind: input, shape index: {}]
  %s1 = inlined_call_operand.<no memory space> [shape: f32[1,1], index: 1, kind: input, shape index: {}]
  %s2 = inlined_call_operand.vmem [shape: f32[8,128], index: 2, kind: input, shape index: {}, may-alias: {2,3}]
  %s3 = inlined_call_operand.vmem [shape: f32[8,128], index: 3, kind: output, shape index: {}, may-alias: {2,3}]
  %s4 = sld [smem:[#allocation0]]
  $region22: #{_softmax_stable.3} parent=0
    _
  %s6 = ssub.s32 1, %s4
  %s7 = scalar_select 0, %s6, %s4
  %8 = sst [smem:[#allocation2]] %s0
  %9 = sst [smem:[#allocation3]] %s1
  // Predicated region
  $region2: #{_softmax_stable.3} parent=0 // pred_check
    _
  $region3: #{_softmax_stable.3} parent=0 // pred_check_branch
    %11 = sbr.rel (0) target = $region5
  $region4: #{_softmax_stable.3} parent=0 // pred_region
    _
  $region5: #{_softmax_stable.3} parent=0 // pred_fallthru
    _
  // Predicated region
  $region6: #{_softmax_stable.3} parent=0 // pred_check
    _
  $region7: #{_softmax_stable.3} parent=0 // pred_check_branch
    %13 = sbr.rel (0) target = $region9
  $region8: #{_softmax_stable.3} parent=0 // pred_region
    _
  $region9: #{_softmax_stable.3} parent=0 // pred_fallthru
    _
  // Predicated region
  $region10: #{_softmax_stable.3} parent=0 // pred_check
    _
  $region11: #{_softmax_stable.3} parent=0 // pred_check_branch
    %15 = sbr.rel (0) target = $region13
  $region12: #{_softmax_stable.3} parent=0 // pred_region
    _
  $region13: #{_softmax_stable.3} parent=0 // pred_fallthru
    _
  %s16 = sld [smem:[#allocation2]]
  %s17 = sld [smem:[#allocation3]]
  %v18 = vld [vmem:[%s2] sm:$0xff]
  %v19 = vstv %s16
  %v20 = vsub.f32 %v18, %v19
  %v21 = vmul.f32 %v20, 1.442695
  %v22 = vpow.pop %v21
  %v23 = vstv %s17
  %v24 = vmul.f32 %v22, %v23
  %25 = vst [vmem:[%s3] sm:$0xff] %v24
  // Predicated region
  $region14: #{_softmax_stable.3} parent=0 // pred_check
    _
  $region15: #{_softmax_stable.3} parent=0 // pred_check_branch
    %27 = sbr.rel (0) target = $region17
  $region16: #{_softmax_stable.3} parent=0 // pred_region
    _
  $region17: #{_softmax_stable.3} parent=0 // pred_fallthru
    _
  // Predicated region
  $region18: #{_softmax_stable.3} parent=0 // pred_check
    _
  $region19: #{_softmax_stable.3} parent=0 // pred_check_branch
    %29 = sbr.rel (0) target = $region21
  $region20: #{_softmax_stable.3} parent=0 // pred_region
    _
  $region21: #{_softmax_stable.3} parent=0 // pred_fallthru
    _

</llo_original>
